<compile_context>
chip_gen: v7x
topology: tpu7x:2x2x1
jax: 0.10.0
libtpu: 0.0.40
codegen_flags: <defaults>
</compile_context>

<pallas_src>
import jax
import jax.numpy as jnp
from jax.experimental import pallas as pl
from jax.experimental.pallas import tpu as pltpu


def _make_channel_gate_kernel(hw_true):
    """hw_true is the un-padded H*W (static); the ref's last dim may be padded."""

    def kernel(w1t_ref, b1_ref, w2t_ref, b2_ref, x_ref, o_ref):
        nb, c, hw = x_ref.shape
        x = x_ref[...]                                  # native dtype (no f32 copy)

        # ---- Global spatial pooling over HW (lane axis), f32 accumulation ----
        sum_pool = jnp.sum(x, axis=2, dtype=jnp.float32)          # zero-pad safe
        avg_pool = sum_pool * (1.0 / hw_true)                     # (NB, C)
        if hw_true != hw:
            lane = jax.lax.broadcasted_iota(jnp.int32, (nb, c, hw), 2)
            neg = jnp.asarray(-jnp.inf, dtype=x.dtype)
            x_for_max = jnp.where(lane < hw_true, x, neg)
        else:
            x_for_max = x
        max_pool = jnp.max(x_for_max, axis=2).astype(jnp.float32)  # (NB, C)

        # ---- Shared 2-layer MLP, applied ONCE to the stacked [avg; max] ----
        w1t = w1t_ref[...]                              # (C, hidden)
        b1 = b1_ref[...]                                # (1, hidden)
        w2t = w2t_ref[...]                              # (hidden, C)
        b2 = b2_ref[...]                                # (1, C)

        p = jnp.concatenate([avg_pool, max_pool], axis=0)          # (2*NB, C)
        h = jnp.maximum(
            jnp.dot(p, w1t, preferred_element_type=jnp.float32) + b1, 0.0)
        att2 = jnp.dot(h, w2t, preferred_element_type=jnp.float32) + b2
        att = att2[:nb] + att2[nb:]                                # (NB, C)
        gate = jax.nn.sigmoid(att).astype(x.dtype)                 # (NB, C)

        # ---- Per-channel gating, broadcast across HW lanes, native dtype ----
        o_ref[...] = (x * gate[:, :, None]).astype(o_ref.dtype)

    return kernel


def channel_gate(x, w1, b1, w2, b2, *, block_batch=None):
    """x: (N, C, H, W); w1: (hidden, C); b1: (hidden,); w2: (C, hidden); b2: (C,)."""
    N, C, H, W = x.shape
    HW = H * W
    hidden = w1.shape[0]
    itemsize = jnp.dtype(x.dtype).itemsize

    # ---- Lane-dense layout: pad HW to a multiple of 128 for unmasked vld/vst ----
    HW_pad = ((HW + 127) // 128) * 128
    x2 = x.reshape(N, C, HW)
    if HW_pad != HW:
        x2 = jnp.pad(x2, ((0, 0), (0, 0), (0, HW_pad - HW)))

    # ---- Generation-aware block sizing from the device's VMEM ----
    try:
        vmem_cap = int(pltpu.get_tpu_info().vmem_capacity_bytes)
    except Exception:  # conservative fallback (v7x-sized)
        vmem_cap = 64 * 1024 * 1024

    per_img_bytes = C * HW_pad * itemsize
    if block_batch is None:
        # Target one x-block of ~VMEM/8 so 4 double-buffered in/out blocks ~= VMEM/2.
        target_block_bytes = max(per_img_bytes, vmem_cap // 8)
        nb = max(1, min(N, target_block_bytes // per_img_bytes))
        # Keep the grid at >= 2 steps so v7x's two TensorCores both get work.
        if N >= 2:
            nb = min(nb, -(-N // 2))
        block_batch = int(nb)
    NB = block_batch
    grid_n = pl.cdiv(N, NB)   # ragged last block: padded rows compute garbage, dropped

    # ---- Host-side weight prep (free): transposes + 2-D biases ----
    w1t = jnp.asarray(w1, jnp.float32).T               # (C, hidden)
    w2t = jnp.asarray(w2, jnp.float32).T               # (hidden, C)
    b1r = jnp.asarray(b1, jnp.float32).reshape(1, hidden)
    b2r = jnp.asarray(b2, jnp.float32).reshape(1, C)

    # ---- Honest VMEM accounting: blocks + padded, double-buffered weights ----
    def _padded_tile_bytes(r, c):
        return (((r + 7) // 8) * 8) * (((c + 127) // 128) * 128) * 4

    weight_bytes = 2 * (_padded_tile_bytes(C, hidden) + _padded_tile_bytes(1, hidden)
                        + _padded_tile_bytes(hidden, C) + _padded_tile_bytes(1, C))
    block_bytes = NB * C * HW_pad * itemsize
    vmem_budget_cap = int(vmem_cap * 0.85)              # headroom for compiler scratch
    vmem_limit = min(vmem_budget_cap,
                     max(16 * 1024 * 1024,
                         4 * block_bytes + weight_bytes + (2 << 20)))

    kernel = _make_channel_gate_kernel(HW)

    out = pl.pallas_call(
        kernel,
        out_shape=jax.ShapeDtypeStruct((N, C, HW_pad), x.dtype),
        grid_spec=pltpu.PrefetchScalarGridSpec(
            num_scalar_prefetch=0,
            grid=(grid_n,),
            in_specs=[
                pl.BlockSpec((C, hidden), lambda n: (0, 0)),   # W1^T
                pl.BlockSpec((1, hidden), lambda n: (0, 0)),   # b1
                pl.BlockSpec((hidden, C), lambda n: (0, 0)),   # W2^T
                pl.BlockSpec((1, C), lambda n: (0, 0)),        # b2
                pl.BlockSpec((NB, C, HW_pad), lambda n: (n, 0, 0)),
            ],
            out_specs=pl.BlockSpec((NB, C, HW_pad), lambda n: (n, 0, 0)),
        ),
        compiler_params=pltpu.CompilerParams(
            dimension_semantics=("parallel",),
            vmem_limit_bytes=vmem_limit,
        ),
    )(w1t, b1r, w2t, b2r, x2)

    if HW_pad != HW:
        out = out[:, :, :HW]
    return out.reshape(N, C, H, W)


def channel_gate_ref(x, w1, b1, w2, b2):
    """Pure-JAX reference matching PyTorch ChannelGate(pool_types=['avg','max'])."""
    avg = jnp.mean(x, axis=(2, 3))                      # (N, C)
    mx = jnp.max(x, axis=(2, 3))                        # (N, C)

    def mlp(p):
        h = jnp.maximum(p @ w1.T + b1, 0.0)
        return h @ w2.T + b2

    att = mlp(avg) + mlp(mx)
    gate = jax.nn.sigmoid(att)
    return x * gate[:, :, None, None]


if __name__ == "__main__":
    key = jax.random.PRNGKey(0)
    kx, k1, k2, k3, k4 = jax.random.split(key, 5)

    # Small shapes consistent with ChannelGate: gate_channels=32, reduction_ratio=4.
    N, C, H, W = 4, 32, 16, 16
    reduction_ratio = 4
    hidden = C // reduction_ratio

    x = jax.random.normal(kx, (N, C, H, W), dtype=jnp.float32)
    w1 = 0.1 * jax.random.normal(k1, (hidden, C), dtype=jnp.float32)   # Linear(C -> C/r)
    b1 = 0.1 * jax.random.normal(k2, (hidden,), dtype=jnp.float32)
    w2 = 0.1 * jax.random.normal(k3, (C, hidden), dtype=jnp.float32)   # Linear(C/r -> C)
    b2 = 0.1 * jax.random.normal(k4, (C,), dtype=jnp.float32)

    y = channel_gate(x, w1, b1, w2, b2)
    jax.block_until_ready(y)

    y_ref = channel_gate_ref(x, w1, b1, w2, b2)
    err = float(jnp.max(jnp.abs(y - y_ref)))
    assert err < 1e-4, f"mismatch vs reference: max abs err = {err}"

    # Exercise the ragged-batch (cdiv) path and HW padding path with odd shapes.
    N2, C2, H2, W2 = 3, 32, 7, 9    # N=3 not divisible, H*W=63 not a 128 multiple
    x_odd = jax.random.normal(kx, (N2, C2, H2, W2), dtype=jnp.float32)
    y_odd = channel_gate(x_odd, w1, b1, w2, b2, block_batch=2)
    jax.block_until_ready(y_odd)
    err_odd = float(jnp.max(jnp.abs(y_odd - channel_gate_ref(x_odd, w1, b1, w2, b2))))
    assert err_odd < 1e-4, f"mismatch (ragged) vs reference: max abs err = {err_odd}"

    print("KERNEL_OK")
</pallas_src>

<mosaic_0001>
module attributes {stable_mosaic.version = 11 : i64} {
  func.func @kernel(%arg0: i32, %arg1: memref<32x8xf32, #tpu.memory_space<vmem>>, %arg2: memref<1x8xf32, #tpu.memory_space<vmem>>, %arg3: memref<8x32xf32, #tpu.memory_space<vmem>>, %arg4: memref<1x32xf32, #tpu.memory_space<vmem>>, %arg5: memref<2x32x256xf32, #tpu.memory_space<vmem>>, %arg6: memref<2x32x256xf32, #tpu.memory_space<vmem>>) attributes {dimension_semantics = [#tpu.dimension_semantics<parallel>], iteration_bounds = array<i64: 2>, scalar_prefetch = 0 : i64, scratch_operands = 0 : i64, tpu.core_type = #tpu.core_type<tc>, window_params = [{pipeline_mode = #tpu.pipeline_mode<synchronous>, transform_indices = @transform_0, window_bounds = array<i64: 32, 8>}, {pipeline_mode = #tpu.pipeline_mode<synchronous>, transform_indices = @transform_1, window_bounds = array<i64: 1, 8>}, {pipeline_mode = #tpu.pipeline_mode<synchronous>, transform_indices = @transform_2, window_bounds = array<i64: 8, 32>}, {pipeline_mode = #tpu.pipeline_mode<synchronous>, transform_indices = @transform_3, window_bounds = array<i64: 1, 32>}, {transform_indices = @transform_4, window_bounds = array<i64: 2, 32, 256>}, {transform_indices = @transform_5, window_bounds = array<i64: 2, 32, 256>}]} {
    %c0 = arith.constant 0 : index
    %c0_0 = arith.constant 0 : index
    %c0_1 = arith.constant 0 : index
    %0 = vector.load %arg5[%c0, %c0_0, %c0_1] : memref<2x32x256xf32, #tpu.memory_space<vmem>>, vector<2x32x256xf32>
    %cst = arith.constant dense<0.000000e+00> : vector<2x32xf32>
    %1 = vector.multi_reduction <add>, %0, %cst [2] : vector<2x32x256xf32> to vector<2x32xf32>
    %cst_2 = arith.constant 3.906250e-03 : f32
    %2 = vector.broadcast %cst_2 : f32 to vector<2x32xf32>
    %3 = arith.mulf %1, %2 : vector<2x32xf32>
    %cst_3 = arith.constant dense<0xFF800000> : vector<2x32xf32>
    %4 = vector.multi_reduction <maximumf>, %0, %cst_3 [2] : vector<2x32x256xf32> to vector<2x32xf32>
    %c0_4 = arith.constant 0 : index
    %c0_5 = arith.constant 0 : index
    %5 = vector.load %arg1[%c0_4, %c0_5] : memref<32x8xf32, #tpu.memory_space<vmem>>, vector<32x8xf32>
    %c0_6 = arith.constant 0 : index
    %c0_7 = arith.constant 0 : index
    %6 = vector.load %arg2[%c0_6, %c0_7] : memref<1x8xf32, #tpu.memory_space<vmem>>, vector<1x8xf32>
    %c0_8 = arith.constant 0 : index
    %c0_9 = arith.constant 0 : index
    %7 = vector.load %arg3[%c0_8, %c0_9] : memref<8x32xf32, #tpu.memory_space<vmem>>, vector<8x32xf32>
    %c0_10 = arith.constant 0 : index
    %c0_11 = arith.constant 0 : index
    %8 = vector.load %arg4[%c0_10, %c0_11] : memref<1x32xf32, #tpu.memory_space<vmem>>, vector<1x32xf32>
    %9 = tpu.concatenate %3, %4 in 0 : vector<2x32xf32>, vector<2x32xf32> -> vector<4x32xf32>
    %cst_12 = arith.constant dense<0.000000e+00> : vector<4x8xf32>
    %10 = tpu.matmul %9, %5, %cst_12 {dimension_numbers = #tpu.dot_dimension_numbers<[1], [0], [0], [1], [0, 0, 1, 1], [], []>} : vector<4x32xf32>, vector<32x8xf32>, vector<4x8xf32> -> vector<4x8xf32>
    %11 = vector.broadcast %6 : vector<1x8xf32> to vector<4x8xf32>
    %12 = arith.addf %10, %11 : vector<4x8xf32>
    %cst_13 = arith.constant 0.000000e+00 : f32
    %13 = vector.broadcast %cst_13 : f32 to vector<4x8xf32>
    %14 = arith.maximumf %12, %13 : vector<4x8xf32>
    %cst_14 = arith.constant dense<0.000000e+00> : vector<4x32xf32>
    %15 = tpu.matmul %14, %7, %cst_14 {dimension_numbers = #tpu.dot_dimension_numbers<[1], [0], [0], [1], [0, 0, 1, 1], [], []>} : vector<4x8xf32>, vector<8x32xf32>, vector<4x32xf32> -> vector<4x32xf32>
    %16 = vector.broadcast %8 : vector<1x32xf32> to vector<4x32xf32>
    %17 = arith.addf %15, %16 : vector<4x32xf32>
    %18 = vector.extract_strided_slice %17 {offsets = [0, 0], sizes = [2, 32], strides = [1, 1]} : vector<4x32xf32> to vector<2x32xf32>
    %19 = vector.extract_strided_slice %17 {offsets = [2, 0], sizes = [2, 32], strides = [1, 1]} : vector<4x32xf32> to vector<2x32xf32>
    %20 = arith.addf %18, %19 : vector<2x32xf32>
    %21 = arith.negf %20 : vector<2x32xf32>
    %22 = math.exp %21 : vector<2x32xf32>
    %cst_15 = arith.constant 1.000000e+00 : f32
    %23 = vector.broadcast %cst_15 : f32 to vector<2x32xf32>
    %24 = arith.addf %23, %22 : vector<2x32xf32>
    %25 = arith.divf %23, %24 : vector<2x32xf32>
    %26 = vector.shape_cast %25 : vector<2x32xf32> to vector<2x32x1xf32>
    %27 = vector.broadcast %26 : vector<2x32x1xf32> to vector<2x32x256xf32>
    %28 = arith.mulf %0, %27 : vector<2x32x256xf32>
    %c0_16 = arith.constant 0 : index
    %c0_17 = arith.constant 0 : index
    %c0_18 = arith.constant 0 : index
    %29 = vector.load %arg6[%c0_16, %c0_17, %c0_18] : memref<2x32x256xf32, #tpu.memory_space<vmem>>, vector<2x32x256xf32>
    tpu.vector_store %arg6[%c0_16, %c0_17, %c0_18], %28 {strides = array<i32>} : memref<2x32x256xf32, #tpu.memory_space<vmem>>, vector<2x32x256xf32>,
    return
  }
  func.func @transform_0(%arg0: i32) -> (i32, i32) {
    %c0_i32 = arith.constant 0 : i32
    %c0_i32_0 = arith.constant 0 : i32
    %c0_i32_1 = arith.constant 0 : i32
    return %c0_i32, %c0_i32_0 : i32, i32
  }
  func.func @transform_1(%arg0: i32) -> (i32, i32) {
    %c0_i32 = arith.constant 0 : i32
    %c0_i32_0 = arith.constant 0 : i32
    %c0_i32_1 = arith.constant 0 : i32
    return %c0_i32, %c0_i32_0 : i32, i32
  }
  func.func @transform_2(%arg0: i32) -> (i32, i32) {
    %c0_i32 = arith.constant 0 : i32
    %c0_i32_0 = arith.constant 0 : i32
    %c0_i32_1 = arith.constant 0 : i32
    return %c0_i32, %c0_i32_0 : i32, i32
  }
  func.func @transform_3(%arg0: i32) -> (i32, i32) {
    %c0_i32 = arith.constant 0 : i32
    %c0_i32_0 = arith.constant 0 : i32
    %c0_i32_1 = arith.constant 0 : i32
    return %c0_i32, %c0_i32_0 : i32, i32
  }
  func.func @transform_4(%arg0: i32) -> (i32, i32, i32) {
    %c0_i32 = arith.constant 0 : i32
    %c0_i32_0 = arith.constant 0 : i32
    %c0_i32_1 = arith.constant 0 : i32
    return %arg0, %c0_i32, %c0_i32_0 : i32, i32, i32
  }
  func.func @transform_5(%arg0: i32) -> (i32, i32, i32) {
    %c0_i32 = arith.constant 0 : i32
    %c0_i32_0 = arith.constant 0 : i32
    %c0_i32_1 = arith.constant 0 : i32
    return %arg0, %c0_i32, %c0_i32_0 : i32, i32, i32
  }
}

</mosaic_0001>

<llo_original>
// kernel: tpu_custom_call.1
$region0: #{tpu_custom_call.1}
  #allocation0 [shape = 'u32[]', space=smem, size = 0x4, offset = 0x4, fixed_abs, tag = 'smem constant byte address 0x4 - core index']
  #allocation1 [shape = 'u32[144,128]{1,0:T(1,128)}', space=vmem, size = 0x12000, scoped, tag = 'internal scratch']
  %s0 = inlined_call_operand.vmem [shape: f32[32,8], index: 0, kind: input, shape index: {}]
  %s1 = inlined_call_operand.vmem [shape: f32[1,8], index: 1, kind: input, shape index: {}]
  %s2 = inlined_call_operand.vmem [shape: f32[8,32], index: 2, kind: input, shape index: {}]
  %s3 = inlined_call_operand.vmem [shape: f32[1,32], index: 3, kind: input, shape index: {}]
  %s4 = inlined_call_operand.hbm [shape: f32[4,32,256], index: 4, kind: input, shape index: {}]
  %s5 = inlined_call_operand.hbm [shape: f32[4,32,256], index: 5, kind: output, shape index: {}]
  %s6 = sld [smem:[#allocation0]]
  $region57: #{tpu_custom_call.1} parent=0
    _
  %s8 = ssub.s32 1, %s6
  %s9 = scalar_select 0, %s8, %s6
  $region1: #{tpu_custom_call.1} parent=0
    #allocation2 [shape = 'u8[131072]{0}', space=vmem, size = 0x20000, scoped, tag = 'input window, operand 4']
    #allocation3 [shape = 's32[2]{0}', space=sflag, size = 0x8, scoped, tag = 'scoped memory for tpu_custom_call.1']
    #allocation4 [shape = 's32[2]{0}', space=sflag, size = 0x8, scoped, tag = 'scoped memory for tpu_custom_call.1']
    #allocation5 [shape = 'u8[131072]{0}', space=vmem, size = 0x20000, scoped, tag = 'output window, operand 0']
    %10 = vsyncpa [#allocation3], 0
    %s11 = scalar_lea.sflag [#allocation3], 1
    %12 = vsyncpa %s11, 0
    %13 = vsyncpa [#allocation4], 0
    %s14 = scalar_lea.sflag [#allocation4], 1
    %15 = vsyncpa %s14, 0
    loop: start=0, step=1, limit=4
    $region2: #{tpu_custom_call.1} parent=1 // loop_pre_header
      _
    $region3: #{tpu_custom_call.1} parent=1 // loop_header
      %s17 = sphi 0, %s21
      %p18 = scmp.ge.s32.totalorder %s17, 4
      %s25 = sphi 0, %s25
      %s27 = sphi 0, %s25
      %s28 = sphi 0, %s27
      %s42 = sphi 0, %s28
      %s46 = sphi 0, %s46
      %s48 = sphi 0, %s46
      %s49 = sphi 0, %s48
      %s63 = sphi 0, %s49
      %s67 = sphi 0, %s67
      %s69 = sphi 0, %s67
      %s70 = sphi 0, %s69
      %s84 = sphi 0, %s70
      %s88 = sphi 0, %s88
      %s90 = sphi 0, %s88
      %s91 = sphi 0, %s90
      %s105 = sphi 0, %s91
      %s111 = sphi 0, %s113
      %s114 = sphi 0, %s111
      %s115 = sphi 0, %s114
      %s131 = sphi 0, %s115
      %s137 = sphi 0, %s139
      %s140 = sphi 0, %s137
      %s141 = sphi 0, %s140
      %s157 = sphi 0, %s141
    $region4: #{tpu_custom_call.1} parent=1 // loop_header_branch
      %20 = sbr.rel (%p18) target = $region8
    $region5: #{tpu_custom_call.1} parent=1 // loop_body
      %s22 = ssub.s32 %s17, 1
      %s23 = ssub.s32 %s17, 2
      %s24 = sadd.s32 %s17, 1
      %s26 = sadd.s32 %s25, 1
      %p29 = scmp.eq.s32.totalorder %s17, 1
      %p30 = scmp.ne.s32.totalorder %s25, %s27
      %p31 = scmp.eq.s32.totalorder %s17, 0
      %p32 = por %p30, %p31
      %p33 = scmp.ne.s32.totalorder %s25, %s27
      %p34 = scmp.eq.s32.totalorder %s22, 1
      %p35 = por %p33, %p34
      %p36 = scmp.ne.s32.totalorder %s27, %s28
      %p37 = scmp.eq.s32.totalorder %s22, 0
      %p38 = por %p36, %p37
      %p39 = scmp.ne.s32.totalorder %s27, %s28
      %p40 = scmp.eq.s32.totalorder %s23, 1
      %p41 = por %p39, %p40
      %p43 = scmp.ne.s32.totalorder %s28, %s42
      %p44 = scmp.eq.s32.totalorder %s23, 0
      %p45 = por %p43, %p44
      %s47 = sadd.s32 %s46, 1
      %p50 = scmp.eq.s32.totalorder %s17, 1
      %p51 = scmp.ne.s32.totalorder %s46, %s48
      %p52 = scmp.eq.s32.totalorder %s17, 0
      %p53 = por %p51, %p52
      %p54 = scmp.ne.s32.totalorder %s46, %s48
      %p55 = scmp.eq.s32.totalorder %s22, 1
      %p56 = por %p54, %p55
      %p57 = scmp.ne.s32.totalorder %s48, %s49
      %p58 = scmp.eq.s32.totalorder %s22, 0
      %p59 = por %p57, %p58
      %p60 = scmp.ne.s32.totalorder %s48, %s49
      %p61 = scmp.eq.s32.totalorder %s23, 1
      %p62 = por %p60, %p61
      %p64 = scmp.ne.s32.totalorder %s49, %s63
      %p65 = scmp.eq.s32.totalorder %s23, 0
      %p66 = por %p64, %p65
      %s68 = sadd.s32 %s67, 1
      %p71 = scmp.eq.s32.totalorder %s17, 1
      %p72 = scmp.ne.s32.totalorder %s67, %s69
      %p73 = scmp.eq.s32.totalorder %s17, 0
      %p74 = por %p72, %p73
      %p75 = scmp.ne.s32.totalorder %s67, %s69
      %p76 = scmp.eq.s32.totalorder %s22, 1
      %p77 = por %p75, %p76
      %p78 = scmp.ne.s32.totalorder %s69, %s70
      %p79 = scmp.eq.s32.totalorder %s22, 0
      %p80 = por %p78, %p79
      %p81 = scmp.ne.s32.totalorder %s69, %s70
      %p82 = scmp.eq.s32.totalorder %s23, 1
      %p83 = por %p81, %p82
      %p85 = scmp.ne.s32.totalorder %s70, %s84
      %p86 = scmp.eq.s32.totalorder %s23, 0
      %p87 = por %p85, %p86
      %s89 = sadd.s32 %s88, 1
      %p92 = scmp.eq.s32.totalorder %s17, 1
      %p93 = scmp.ne.s32.totalorder %s88, %s90
      %p94 = scmp.eq.s32.totalorder %s17, 0
      %p95 = por %p93, %p94
      %p96 = scmp.ne.s32.totalorder %s88, %s90
      %p97 = scmp.eq.s32.totalorder %s22, 1
      %p98 = por %p96, %p97
      %p99 = scmp.ne.s32.totalorder %s90, %s91
      %p100 = scmp.eq.s32.totalorder %s22, 0
      %p101 = por %p99, %p100
      %p102 = scmp.ne.s32.totalorder %s90, %s91
      %p103 = scmp.eq.s32.totalorder %s23, 1
      %p104 = por %p102, %p103
      %p106 = scmp.ne.s32.totalorder %s91, %s105
      %p107 = scmp.eq.s32.totalorder %s23, 0
      %p108 = por %p106, %p107
      %s109 = ssub.s32 %s17, %s24
      %p110 = scmp.eq.s32.totalorder %s109, 0
      %s112 = sadd.s32 %s111, 1
      %s113 = scalar_select %p110, %s111, %s112
      %p116 = pneg %p110
      %p117 = scmp.eq.s32.totalorder %s17, 1
      %p118 = por %p116, %p117
      %p119 = scmp.ne.s32.totalorder %s111, %s114
      %p120 = scmp.eq.s32.totalorder %s17, 0
      %p121 = por %p119, %p120
      %p122 = scmp.ne.s32.totalorder %s111, %s114
      %p123 = scmp.eq.s32.totalorder %s22, 1
      %p124 = por %p122, %p123
      %p125 = scmp.ne.s32.totalorder %s114, %s115
      %p126 = scmp.eq.s32.totalorder %s22, 0
      %p127 = por %p125, %p126
      %p128 = scmp.ne.s32.totalorder %s114, %s115
      %p129 = scmp.eq.s32.totalorder %s23, 1
      %p130 = por %p128, %p129
      %p132 = scmp.ne.s32.totalorder %s115, %s131
      %p133 = scmp.eq.s32.totalorder %s23, 0
      %p134 = por %p132, %p133
      %s135 = ssub.s32 %s17, %s24
      %p136 = scmp.eq.s32.totalorder %s135, 0
      %s138 = sadd.s32 %s137, 1
      %s139 = scalar_select %p136, %s137, %s138
      %p142 = pneg %p136
      %p143 = scmp.eq.s32.totalorder %s17, 1
      %p144 = por %p142, %p143
      %p145 = scmp.ne.s32.totalorder %s137, %s140
      %p146 = scmp.eq.s32.totalorder %s17, 0
      %p147 = por %p145, %p146
      %p148 = scmp.ne.s32.totalorder %s137, %s140
      %p149 = scmp.eq.s32.totalorder %s22, 1
      %p150 = por %p148, %p149
      %p151 = scmp.ne.s32.totalorder %s140, %s141
      %p152 = scmp.eq.s32.totalorder %s22, 0
      %p153 = por %p151, %p152
      %p154 = scmp.ne.s32.totalorder %s140, %s141
      %p155 = scmp.eq.s32.totalorder %s23, 1
      %p156 = por %p154, %p155
      %p158 = scmp.ne.s32.totalorder %s141, %s157
      %p159 = scmp.eq.s32.totalorder %s23, 0
      %p160 = por %p158, %p159
      %p161 = scmp.le.s32.totalorder 1, %s17
      %p162 = scmp.lt.s32.totalorder %s17, 3
      %p163 = pnand %p161, %p162
      %p164 = pneg %p163
      // Predicated region
      $region9: #{tpu_custom_call.1} parent=5 // pred_check
        _
      $region10: #{tpu_custom_call.1} parent=5 // pred_check_branch
        %166 = sbr.rel (%p163) target = $region12
      $region11: #{tpu_custom_call.1} parent=5 // pred_region
        %s167 = ssub.s32 %s17, 1
        // Predicated region
        $region13: #{tpu_custom_call.1} parent=11 // pred_check
          %p168 = pneg %p38
        $region14: #{tpu_custom_call.1} parent=11 // pred_check_branch
          %170 = sbr.rel (%p168) target = $region16
        $region15: #{tpu_custom_call.1} parent=11 // pred_region
          _
        $region16: #{tpu_custom_call.1} parent=11 // pred_fallthru
          _
        // Predicated region
        $region17: #{tpu_custom_call.1} parent=11 // pred_check
          %p171 = pneg %p59
        $region18: #{tpu_custom_call.1} parent=11 // pred_check_branch
          %173 = sbr.rel (%p171) target = $region20
        $region19: #{tpu_custom_call.1} parent=11 // pred_region
          _
        $region20: #{tpu_custom_call.1} parent=11 // pred_fallthru
          _
        // Predicated region
        $region21: #{tpu_custom_call.1} parent=11 // pred_check
          %p174 = pneg %p80
        $region22: #{tpu_custom_call.1} parent=11 // pred_check_branch
          %176 = sbr.rel (%p174) target = $region24
        $region23: #{tpu_custom_call.1} parent=11 // pred_region
          _
        $region24: #{tpu_custom_call.1} parent=11 // pred_fallthru
          _
        // Predicated region
        $region25: #{tpu_custom_call.1} parent=11 // pred_check
          %p177 = pneg %p101
        $region26: #{tpu_custom_call.1} parent=11 // pred_check_branch
          %179 = sbr.rel (%p177) target = $region28
        $region27: #{tpu_custom_call.1} parent=11 // pred_region
          _
        $region28: #{tpu_custom_call.1} parent=11 // pred_fallthru
          _
      $region12: #{tpu_custom_call.1} parent=5 // pred_fallthru
        _
      %p180 = scmp.lt.s32.totalorder %s17, 2
      // Predicated region
      $region29: #{tpu_custom_call.1} parent=5 // pred_check
        %p181 = pneg %p180
      $region30: #{tpu_custom_call.1} parent=5 // pred_check_branch
        %183 = sbr.rel (%p181) target = $region32
      $region31: #{tpu_custom_call.1} parent=5 // pred_region
        // Predicated region
        $region33: #{tpu_custom_call.1} parent=31 // pred_check
          %p184 = pneg %p121
        $region34: #{tpu_custom_call.1} parent=31 // pred_check_branch
          %186 = sbr.rel (%p184) target = $region36
        $region35: #{tpu_custom_call.1} parent=31 // pred_region
          %s187 = sand.u32 %s111, 1
          %s188 = scalar_lea.sflag [#allocation3], %s187
          %s189 = sand.u32 %s111, 1
          %s190 = smul.addr %s189, 128
          %s191 = scalar_lea.vmem [#allocation2], %s190
          %s192 = smul.u32 2, %s17
          %s194 = ssub.s32 2048, 2048
          %195 = vsyncadd %s188, %s194
          %s196 = smul.addr %s192, 8
          %s197 = smul.addr %s196, 128
          %s198 = scalar_lea.hbm %s4, %s197
          %s199 = sshll.u32 %s191, 4
          %s200 = int_to_ptr.vmem [resolvable:$true] %s199
          %205 = dma.hbm_to_vmem [thread:$0]  %s198, 2048, %s200, %s188, 256, 256, 16
        $region36: #{tpu_custom_call.1} parent=31 // pred_fallthru
          _
      $region32: #{tpu_custom_call.1} parent=5 // pred_fallthru
        _
      %p206 = scmp.le.s32.totalorder 1, %s17
      %p207 = scmp.lt.s32.totalorder %s17, 3
      %p208 = pnand %p206, %p207
      %p209 = pneg %p208
      // Predicated region
      $region37: #{tpu_custom_call.1} parent=5 // pred_check
        _
      $region38: #{tpu_custom_call.1} parent=5 // pred_check_branch
        %211 = sbr.rel (%p208) target = $region40
      $region39: #{tpu_custom_call.1} parent=5 // pred_region
        %s212 = ssub.s32 %s17, 1
        %s213 = sand.u32 %s114, 1
        %s214 = scalar_lea.sflag [#allocation3], %s213
        %s215 = sand.u32 %s114, 1
        %s216 = smul.addr %s215, 128
        %s217 = scalar_lea.vmem [#allocation2], %s216
        // Predicated region
        $region41: #{tpu_custom_call.1} parent=39 // pred_check
          %p218 = pneg %p127
        $region42: #{tpu_custom_call.1} parent=39 // pred_check_branch
          %220 = sbr.rel (%p218) target = $region44
        $region43: #{tpu_custom_call.1} parent=39 // pred_region
          %221 = dma.done %s214, 2048
        $region44: #{tpu_custom_call.1} parent=39 // pred_fallthru
          _
        %p222 = pneg %p38
        %p223 = pneg %p35
        %p224 = pneg %p59
        %p225 = pneg %p56
        %p226 = pneg %p80
        %p227 = pneg %p77
        %p228 = pneg %p101
        %p229 = pneg %p98
        %s230 = sand.u32 %s114, 1
        %s231 = scalar_lea.sflag [#allocation3], %s230
        %s232 = sand.u32 %s114, 1
        %s233 = smul.addr %s232, 128
        %s234 = scalar_lea.vmem [#allocation2], %s233
        %p235 = pneg %p127
        %p236 = pneg %p124
        %p237 = pneg %p153
        %p238 = pneg %p150
        %s239 = sand.u32 %s140, 1
        %s240 = scalar_lea.sflag [#allocation4], %s239
        %s241 = sand.u32 %s140, 1
        %s242 = smul.addr %s241, 128
        %s243 = scalar_lea.vmem [#allocation5], %s242
        %s244 = smul.u32 2, %s22
        %s245 = smul.u32 2, %s22
        %v246 = vld [vmem:[%s217] sm:$0xff]
        %v247 = vld [vmem:[%s217 + $0x8] sm:$0xff]
        %v248 = vld [vmem:[%s217 + $0x10] sm:$0xff]
        %v249 = vld [vmem:[%s217 + $0x18] sm:$0xff]
        %v250 = vld [vmem:[%s217 + $0x20] sm:$0xff]
        %v251 = vld [vmem:[%s217 + $0x28] sm:$0xff]
        %v252 = vld [vmem:[%s217 + $0x30] sm:$0xff]
        %v253 = vld [vmem:[%s217 + $0x38] sm:$0xff]
        %v254 = vld [vmem:[%s217 + $0x40] sm:$0xff]
        %v255 = vld [vmem:[%s217 + $0x48] sm:$0xff]
        %v256 = vld [vmem:[%s217 + $0x50] sm:$0xff]
        %v257 = vld [vmem:[%s217 + $0x58] sm:$0xff]
        %v258 = vld [vmem:[%s217 + $0x60] sm:$0xff]
        %v259 = vld [vmem:[%s217 + $0x68] sm:$0xff]
        %v260 = vld [vmem:[%s217 + $0x70] sm:$0xff]
        %v261 = vld [vmem:[%s217 + $0x78] sm:$0xff]
        %v262 = vadd.f32 %v246, %v247
        %263 = vadd.xlane.f32.xlu0 %v262
        %v264 = vpop.xlane.xlu0 %263
        %v265 = vadd.f32 %v248, %v249
        %266 = vadd.xlane.f32.xlu0 %v265
        %v267 = vpop.xlane.xlu0 %266
        %v268 = vadd.f32 %v250, %v251
        %269 = vadd.xlane.f32.xlu0 %v268
        %v270 = vpop.xlane.xlu0 %269
        %v271 = vadd.f32 %v252, %v253
        %272 = vadd.xlane.f32.xlu0 %v271
        %v273 = vpop.xlane.xlu0 %272
        %v274 = vadd.f32 %v254, %v255
        %275 = vadd.xlane.f32.xlu0 %v274
        %v276 = vpop.xlane.xlu0 %275
        %v277 = vadd.f32 %v256, %v257
        %278 = vadd.xlane.f32.xlu0 %v277
        %v279 = vpop.xlane.xlu0 %278
        %v280 = vadd.f32 %v258, %v259
        %281 = vadd.xlane.f32.xlu0 %v280
        %v282 = vpop.xlane.xlu0 %281
        %v283 = vadd.f32 %v260, %v261
        %284 = vadd.xlane.f32.xlu0 %v283
        %v285 = vpop.xlane.xlu0 %284
        %v286 = vmul.f32 %v264, 0.00390625
        %v287 = vmul.f32 %v267, 0.00390625
        %v288 = vmul.f32 %v270, 0.00390625
        %v289 = vmul.f32 %v273, 0.00390625
        %v290 = vmul.f32 %v276, 0.00390625
        %v291 = vmul.f32 %v279, 0.00390625
        %v292 = vmul.f32 %v282, 0.00390625
        %v293 = vmul.f32 %v285, 0.00390625
        %v294 = vmax.f32 %v246, %v247
        %295 = vmax.xlane.f32.xlu0 %v294
        %v296 = vpop.xlane.xlu0 %295
        %v297 = vmax.f32 %v248, %v249
        %298 = vmax.xlane.f32.xlu0 %v297
        %v299 = vpop.xlane.xlu0 %298
        %v300 = vmax.f32 %v250, %v251
        %301 = vmax.xlane.f32.xlu0 %v300
        %v302 = vpop.xlane.xlu0 %301
        %v303 = vmax.f32 %v252, %v253
        %304 = vmax.xlane.f32.xlu0 %v303
        %v305 = vpop.xlane.xlu0 %304
        %v306 = vmax.f32 %v254, %v255
        %307 = vmax.xlane.f32.xlu0 %v306
        %v308 = vpop.xlane.xlu0 %307
        %v309 = vmax.f32 %v256, %v257
        %310 = vmax.xlane.f32.xlu0 %v309
        %v311 = vpop.xlane.xlu0 %310
        %v312 = vmax.f32 %v258, %v259
        %313 = vmax.xlane.f32.xlu0 %v312
        %v314 = vpop.xlane.xlu0 %313
        %v315 = vmax.f32 %v260, %v261
        %316 = vmax.xlane.f32.xlu0 %v315
        %v317 = vpop.xlane.xlu0 %316
        %v318 = vld [vmem:[%s0] sm:$0xff]
        %v319 = vld [vmem:[%s0 + $0x8] sm:$0xff]
        %v320 = vld [vmem:[%s0 + $0x10] sm:$0xff]
        %v321 = vld [vmem:[%s0 + $0x18] sm:$0xff]
        %v322 = vld [vmem:[%s1] sm:$0x1]
        %v323 = vld [vmem:[%s2] sm:$0xff]
        %v324 = vld [vmem:[%s3] sm:$0x1]
        %v333 = vlaneseq
        %v334 = vand.u32 %v333, 127
        %v335 = vlaneseq
        %v336 = vshrl.u32 %v335, 7
        %v337 = vsub.s32 %v334, %v336
        %v338 = vrot.slane %v286, %v337
        %v339 = vadd.s32 %v334, 4294967288
        %v340 = vlaneseq
        %v341 = vshrl.u32 %v340, 7
        %v342 = vsub.s32 %v339, %v341
        %v343 = vrot.slane %v287, %v342
        %vm344 = vcmask 130112
        %v345 = vsel %vm344, %v343, %v338
        %v346 = vadd.s32 %v334, 4294967280
        %v347 = vlaneseq
        %v348 = vshrl.u32 %v347, 7
        %v349 = vsub.s32 %v346, %v348
        %v350 = vrot.slane %v288, %v349
        %vm351 = vcmask 195712
        %v352 = vsel %vm351, %v350, %v345
        %v353 = vadd.s32 %v334, 4294967272
        %v354 = vlaneseq
        %v355 = vshrl.u32 %v354, 7
        %v356 = vsub.s32 %v353, %v355
        %v357 = vrot.slane %v289, %v356
        %vm358 = vcmask 261312
        %v359 = vsel %vm358, %v357, %v352
        %v360 = vlaneseq
        %v361 = vshrl.u32 %v360, 7
        %v362 = vsub.s32 %v334, %v361
        %v363 = vrot.slane %v290, %v362
        %v364 = vlaneseq
        %v365 = vshrl.u32 %v364, 7
        %v366 = vsub.s32 %v339, %v365
        %v367 = vrot.slane %v291, %v366
        %v368 = vsel %vm344, %v367, %v363
        %v369 = vlaneseq
        %v370 = vshrl.u32 %v369, 7
        %v371 = vsub.s32 %v346, %v370
        %v372 = vrot.slane %v292, %v371
        %v373 = vsel %vm351, %v372, %v368
        %v374 = vlaneseq
        %v375 = vshrl.u32 %v374, 7
        %v376 = vsub.s32 %v353, %v375
        %v377 = vrot.slane %v293, %v376
        %v378 = vsel %vm358, %v377, %v373
        %vm379 = vcmask 1041409
        %v380 = vsel %vm379, %v378, %v359
        %v390 = vlaneseq
        %v391 = vshrl.u32 %v390, 7
        %v392 = vsub.s32 %v334, %v391
        %v393 = vrot.slane %v296, %v392
        %v394 = vlaneseq
        %v395 = vshrl.u32 %v394, 7
        %v396 = vsub.s32 %v339, %v395
        %v397 = vrot.slane %v299, %v396
        %v398 = vsel %vm344, %v397, %v393
        %v399 = vlaneseq
        %v400 = vshrl.u32 %v399, 7
        %v401 = vsub.s32 %v346, %v400
        %v402 = vrot.slane %v302, %v401
        %v403 = vsel %vm351, %v402, %v398
        %v404 = vlaneseq
        %v405 = vshrl.u32 %v404, 7
        %v406 = vsub.s32 %v353, %v405
        %v407 = vrot.slane %v305, %v406
        %v408 = vsel %vm358, %v407, %v403
        %v409 = vlaneseq
        %v410 = vshrl.u32 %v409, 7
        %v411 = vsub.s32 %v334, %v410
        %v412 = vrot.slane %v308, %v411
        %v413 = vlaneseq
        %v414 = vshrl.u32 %v413, 7
        %v415 = vsub.s32 %v339, %v414
        %v416 = vrot.slane %v311, %v415
        %v417 = vsel %vm344, %v416, %v412
        %v418 = vlaneseq
        %v419 = vshrl.u32 %v418, 7
        %v420 = vsub.s32 %v346, %v419
        %v421 = vrot.slane %v314, %v420
        %v422 = vsel %vm351, %v421, %v417
        %v423 = vlaneseq
        %v424 = vshrl.u32 %v423, 7
        %v425 = vsub.s32 %v353, %v424
        %v426 = vrot.slane %v317, %v425
        %v427 = vsel %vm358, %v426, %v422
        %vm428 = vcmask 1043459
        %v429 = vsel %vm428, %v427, %v408
        %vm431 = vcmask 1041408
        %v432 = vsel %vm431, %v380, %v429
        %v434 = vlaneseq
        %v435 = vshrl.u32 %v434, 7
        %v436 = vsub.s32 0, %v435
        %v437 = vrot.slane %v322, %v436
        %vm439 = vcmask 261120
        %v441 = vsel %vm439, %v432, 0
        %443 = vmatprep.subr.mxu0 0.0
        %444 = vmatpush1.msra.mxu0 %v318
        %445 = vmatprep.subr.mxu0 0.0
        %446 = vmatpush1.msra.mxu0 %v319
        %447 = vmatprep.subr.mxu0 0.0
        %448 = vmatpush1.msra.mxu0 %v320
        %449 = vmatprep.subr.mxu0 0.0
        %450 = vmatpush1.msra.mxu0 %v321
        %451 = vmatprep.subr.mxu0 0.0
        %452 = vmatpush1.msra.mxu0 0.0
        %453 = vmatprep.subr.mxu0 0.0
        %454 = vmatpush1.msra.mxu0 0.0
        %455 = vmatprep.subr.mxu0 0.0
        %456 = vmatpush1.msra.mxu0 0.0
        %457 = vmatprep.subr.mxu0 0.0
        %458 = vmatpush1.msra.mxu0 0.0
        %459 = vmatprep.subr.mxu0 0.0
        %460 = vmatpush1.msra.mxu0 0.0
        %461 = vmatprep.subr.mxu0 0.0
        %462 = vmatpush1.msra.mxu0 0.0
        %463 = vmatprep.subr.mxu0 0.0
        %464 = vmatpush1.msra.mxu0 0.0
        %465 = vmatprep.subr.mxu0 0.0
        %466 = vmatpush1.msra.mxu0 0.0
        %467 = vmatprep.subr.mxu0 0.0
        %468 = vmatpush1.msra.mxu0 0.0
        %469 = vmatprep.subr.mxu0 0.0
        %470 = vmatpush1.msra.mxu0 0.0
        %471 = vmatprep.subr.mxu0 0.0
        %472 = vmatpush1.msra.mxu0 0.0
        %473 = vmatprep.subr.mxu0 0.0
        %474 = vmatpush1.msra.mxu0 0.0
        %475 = vmatprep.subr.mxu0 0.0
        %476 = vmatpush1.msra.mxu0 0.0
        %477 = vmatprep.subr.mxu0 0.0
        %478 = vmatpush1.msra.mxu0 0.0
        %479 = vmatprep.subr.mxu0 0.0
        %480 = vmatpush1.msra.mxu0 0.0
        %481 = vmatprep.subr.mxu0 0.0
        %482 = vmatpush1.msra.mxu0 0.0
        %483 = vmatprep.subr.mxu0 0.0
        %484 = vmatpush1.msra.mxu0 0.0
        %485 = vmatprep.subr.mxu0 0.0
        %486 = vmatpush1.msra.mxu0 0.0
        %487 = vmatprep.subr.mxu0 0.0
        %488 = vmatpush1.msra.mxu0 0.0
        %489 = vmatprep.subr.mxu0 0.0
        %490 = vmatpush1.msra.mxu0 0.0
        %491 = vmatprep.subr.mxu0 0.0
        %492 = vmatpush1.msra.mxu0 0.0
        %493 = vmatprep.subr.mxu0 0.0
        %494 = vmatpush1.msra.mxu0 0.0
        %495 = vmatprep.subr.mxu0 0.0
        %496 = vmatpush1.msra.mxu0 0.0
        %497 = vmatprep.subr.mxu0 0.0
        %498 = vmatpush1.msra.mxu0 0.0
        %499 = vmatprep.subr.mxu0 0.0
        %500 = vmatpush1.msra.mxu0 0.0
        %501 = vmatprep.subr.mxu0 0.0
        %502 = vmatpush1.msra.mxu0 0.0
        %503 = vmatprep.subr.mxu0 0.0
        %504 = vmatpush1.msra.mxu0 0.0
        %505 = vmatprep.subr.mxu0 0.0
        %506 = vmatpush1.msra.mxu0 0.0
        %507 = vmatprep.mubr.f32.mxu0 0.0
        %508 = vmatmul.mubr.f32.gmra.mrb[0].mxu0 %v441
        %v509 = vpop.f32.mrb[0].mxu0
        %v510 = vadd.f32 %v437, %v509
        %v511 = vpop.f32.mrb[0].mxu0
        %512 = vdwg.mxu0
        %v513 = vmax.f32 %v510, 0.0
        %v515 = vlaneseq
        %v516 = vshrl.u32 %v515, 7
        %v517 = vsub.s32 0, %v516
        %v518 = vrot.slane %v324, %v517
        %vm520 = vcmask 64512
        %v522 = vsel %vm520, %v513, 0
        %524 = vmatprep.subr.mxu0 0.0
        %525 = vmatpush1.msra.mxu0 %v323
        %526 = vmatprep.subr.mxu0 0.0
        %527 = vmatpush1.msra.mxu0 0.0
        %528 = vmatprep.subr.mxu0 0.0
        %529 = vmatpush1.msra.mxu0 0.0
        %530 = vmatprep.subr.mxu0 0.0
        %531 = vmatpush1.msra.mxu0 0.0
        %532 = vmatprep.subr.mxu0 0.0
        %533 = vmatpush1.msra.mxu0 0.0
        %534 = vmatprep.subr.mxu0 0.0
        %535 = vmatpush1.msra.mxu0 0.0
        %536 = vmatprep.subr.mxu0 0.0
        %537 = vmatpush1.msra.mxu0 0.0
        %538 = vmatprep.subr.mxu0 0.0
        %539 = vmatpush1.msra.mxu0 0.0
        %540 = vmatprep.subr.mxu0 0.0
        %541 = vmatpush1.msra.mxu0 0.0
        %542 = vmatprep.subr.mxu0 0.0
        %543 = vmatpush1.msra.mxu0 0.0
        %544 = vmatprep.subr.mxu0 0.0
        %545 = vmatpush1.msra.mxu0 0.0
        %546 = vmatprep.subr.mxu0 0.0
        %547 = vmatpush1.msra.mxu0 0.0
        %548 = vmatprep.subr.mxu0 0.0
        %549 = vmatpush1.msra.mxu0 0.0
        %550 = vmatprep.subr.mxu0 0.0
        %551 = vmatpush1.msra.mxu0 0.0
        %552 = vmatprep.subr.mxu0 0.0
        %553 = vmatpush1.msra.mxu0 0.0
        %554 = vmatprep.subr.mxu0 0.0
        %555 = vmatpush1.msra.mxu0 0.0
        %556 = vmatprep.subr.mxu0 0.0
        %557 = vmatpush1.msra.mxu0 0.0
        %558 = vmatprep.subr.mxu0 0.0
        %559 = vmatpush1.msra.mxu0 0.0
        %560 = vmatprep.subr.mxu0 0.0
        %561 = vmatpush1.msra.mxu0 0.0
        %562 = vmatprep.subr.mxu0 0.0
        %563 = vmatpush1.msra.mxu0 0.0
        %564 = vmatprep.subr.mxu0 0.0
        %565 = vmatpush1.msra.mxu0 0.0
        %566 = vmatprep.subr.mxu0 0.0
        %567 = vmatpush1.msra.mxu0 0.0
        %568 = vmatprep.subr.mxu0 0.0
        %569 = vmatpush1.msra.mxu0 0.0
        %570 = vmatprep.subr.mxu0 0.0
        %571 = vmatpush1.msra.mxu0 0.0
        %572 = vmatprep.subr.mxu0 0.0
        %573 = vmatpush1.msra.mxu0 0.0
        %574 = vmatprep.subr.mxu0 0.0
        %575 = vmatpush1.msra.mxu0 0.0
        %576 = vmatprep.subr.mxu0 0.0
        %577 = vmatpush1.msra.mxu0 0.0
        %578 = vmatprep.subr.mxu0 0.0
        %579 = vmatpush1.msra.mxu0 0.0
        %580 = vmatprep.subr.mxu0 0.0
        %581 = vmatpush1.msra.mxu0 0.0
        %582 = vmatprep.subr.mxu0 0.0
        %583 = vmatpush1.msra.mxu0 0.0
        %584 = vmatprep.subr.mxu0 0.0
        %585 = vmatpush1.msra.mxu0 0.0
        %586 = vmatprep.subr.mxu0 0.0
        %587 = vmatpush1.msra.mxu0 0.0
        %588 = vmatprep.mubr.f32.mxu0 0.0
        %589 = vmatmul.mubr.f32.gmra.mrb[0].mxu0 %v522
        %v590 = vpop.f32.mrb[0].mxu0
        %v591 = vadd.f32 %v518, %v590
        %v592 = vpop.f32.mrb[0].mxu0
        %593 = vdwg.mxu0
        %v595 = vrot.slane %v591, 2
        %v597 = vadd.f32 %v591, %v595
        %v598 = vxor.u32 %v597, 2147483648
        %v599 = vmul.f32 %v598, 1.442695
        %v600 = vpow.pop %v599
        %v601 = vadd.f32 %v600, 1.0
        %v602 = vrcp.pop %v601
        %v603 = vmul.f32 1.0, %v602
        %v604 = vlaneseq
        %v605 = vshrl.u32 %v604, 7
        %v606 = vsub.s32 0, %v605
        %v607 = vrot.slane %v603, %v606
        %609 = vbcast.lane.b32.xlu0 %v607, 256
        %v610 = vpop.permute.xlu0 %609
        %s612 = sor.u32 256, 8
        %613 = vbcast.lane.b32.xlu0 %v607, %s612
        %v614 = vpop.permute.xlu0 %613
        %s616 = sor.u32 256, 16
        %617 = vbcast.lane.b32.xlu0 %v607, %s616
        %v618 = vpop.permute.xlu0 %617
        %s620 = sor.u32 256, 24
        %621 = vbcast.lane.b32.xlu0 %v607, %s620
        %v622 = vpop.permute.xlu0 %621
        %v623 = vlaneseq
        %v624 = vshrl.u32 %v623, 7
        %v625 = vsub.s32 1, %v624
        %v626 = vrot.slane %v603, %v625
        %628 = vbcast.lane.b32.xlu0 %v626, 256
        %v629 = vpop.permute.xlu0 %628
        %s631 = sor.u32 256, 8
        %632 = vbcast.lane.b32.xlu0 %v626, %s631
        %v633 = vpop.permute.xlu0 %632
        %s635 = sor.u32 256, 16
        %636 = vbcast.lane.b32.xlu0 %v626, %s635
        %v637 = vpop.permute.xlu0 %636
        %s639 = sor.u32 256, 24
        %640 = vbcast.lane.b32.xlu0 %v626, %s639
        %v641 = vpop.permute.xlu0 %640
        %v642 = vmul.f32 %v246, %v610
        %v643 = vmul.f32 %v247, %v610
        %v644 = vmul.f32 %v248, %v614
        %v645 = vmul.f32 %v249, %v614
        %v646 = vmul.f32 %v250, %v618
        %v647 = vmul.f32 %v251, %v618
        %v648 = vmul.f32 %v252, %v622
        %v649 = vmul.f32 %v253, %v622
        %v650 = vmul.f32 %v254, %v629
        %v651 = vmul.f32 %v255, %v629
        %v652 = vmul.f32 %v256, %v633
        %v653 = vmul.f32 %v257, %v633
        %v654 = vmul.f32 %v258, %v637
        %v655 = vmul.f32 %v259, %v637
        %v656 = vmul.f32 %v260, %v641
        %v657 = vmul.f32 %v261, %v641
        %658 = vst [vmem:[%s243] sm:$0xff] %v642
        %659 = vst [vmem:[%s243 + $0x8] sm:$0xff] %v643
        %660 = vst [vmem:[%s243 + $0x10] sm:$0xff] %v644
        %661 = vst [vmem:[%s243 + $0x18] sm:$0xff] %v645
        %662 = vst [vmem:[%s243 + $0x20] sm:$0xff] %v646
        %663 = vst [vmem:[%s243 + $0x28] sm:$0xff] %v647
        %664 = vst [vmem:[%s243 + $0x30] sm:$0xff] %v648
        %665 = vst [vmem:[%s243 + $0x38] sm:$0xff] %v649
        %666 = vst [vmem:[%s243 + $0x40] sm:$0xff] %v650
        %667 = vst [vmem:[%s243 + $0x48] sm:$0xff] %v651
        %668 = vst [vmem:[%s243 + $0x50] sm:$0xff] %v652
        %669 = vst [vmem:[%s243 + $0x58] sm:$0xff] %v653
        %670 = vst [vmem:[%s243 + $0x60] sm:$0xff] %v654
        %671 = vst [vmem:[%s243 + $0x68] sm:$0xff] %v655
        %672 = vst [vmem:[%s243 + $0x70] sm:$0xff] %v656
        %673 = vst [vmem:[%s243 + $0x78] sm:$0xff] %v657
        %s674 = sand.u32 %s140, 1
        %s675 = scalar_lea.sflag [#allocation4], %s674
        %s676 = sand.u32 %s140, 1
        %s677 = smul.addr %s676, 128
        %s678 = scalar_lea.vmem [#allocation5], %s677
        // Predicated region
        $region45: #{tpu_custom_call.1} parent=39 // pred_check
          %p679 = pneg %p150
        $region46: #{tpu_custom_call.1} parent=39 // pred_check_branch
          %681 = sbr.rel (%p679) target = $region48
        $region47: #{tpu_custom_call.1} parent=39 // pred_region
          %s682 = smul.u32 2, %s22
          %s684 = ssub.s32 2048, 2048
          %685 = vsyncadd %s675, %s684
          %s686 = smul.addr %s682, 8
          %s687 = smul.addr %s686, 128
          %s688 = scalar_lea.hbm %s5, %s687
          %s689 = sshll.u32 %s678, 4
          %s690 = int_to_ptr.vmem [resolvable:$true] %s689
          %695 = dma.vmem_to_hbm [thread:$0]  %s690, 2048, %s688, %s675, 256, 256, 16
        $region48: #{tpu_custom_call.1} parent=39 // pred_fallthru
          _
      $region40: #{tpu_custom_call.1} parent=5 // pred_fallthru
        _
      %p696 = scmp.le.s32.totalorder 2, %s17
      // Predicated region
      $region49: #{tpu_custom_call.1} parent=5 // pred_check
        %p697 = pneg %p696
      $region50: #{tpu_custom_call.1} parent=5 // pred_check_branch
        %699 = sbr.rel (%p697) target = $region52
      $region51: #{tpu_custom_call.1} parent=5 // pred_region
        %s700 = ssub.s32 %s17, 2
        // Predicated region
        $region53: #{tpu_custom_call.1} parent=51 // pred_check
          %p701 = pneg %p156
        $region54: #{tpu_custom_call.1} parent=51 // pred_check_branch
          %703 = sbr.rel (%p701) target = $region56
        $region55: #{tpu_custom_call.1} parent=51 // pred_region
          %s704 = sand.u32 %s141, 1
          %s705 = scalar_lea.sflag [#allocation4], %s704
          %s706 = sand.u32 %s141, 1
          %s707 = smul.addr %s706, 128
          %s708 = scalar_lea.vmem [#allocation5], %s707
          %709 = dma.done %s705, 2048
        $region56: #{tpu_custom_call.1} parent=51 // pred_fallthru
          _
      $region52: #{tpu_custom_call.1} parent=5 // pred_fallthru
        _
    $region6: #{tpu_custom_call.1} parent=1 // loop_footer
      %s21 = sadd.s32 1, %s17
    $region7: #{tpu_custom_call.1} parent=1 // loop_footer_branch
      %16 = sbr.rel target = $region3
    $region8: #{tpu_custom_call.1} parent=1 // loop_exit
      _
    %710 = vsyncpa [#allocation3], 1
    %s711 = scalar_lea.sflag [#allocation3], 1
    %712 = vsyncpa %s711, 1
    %713 = vsyncpa [#allocation4], 1
    %s714 = scalar_lea.sflag [#allocation4], 1
    %715 = vsyncpa %s714, 1

</llo_original>
